<compile_context>
chip_gen: v5e
topology: v5e:2x2
jax: 0.10.0
libtpu: 0.0.40
codegen_flags: <defaults>
</compile_context>

<pallas_src>
import functools
from itertools import combinations

import numpy as np
import jax
import jax.numpy as jnp
from jax import lax
from jax.experimental import pallas as pl
from jax.experimental.pallas import tpu as pltpu


def _round_up(x, m):
    return (x + m - 1) // m * m


def _cdiv(a, b):
    return -(-a // b)


# ---------------------------------------------------------------------------
# Kernel 1: tiled LM cross-entropy partial sums (online logsumexp over V axis)
# ---------------------------------------------------------------------------
def _lm_ce_partial_kernel(logits_ref, labels_ref, loss_ref,
                          m_sc, s_sc, t_sc, *, ignore_idx, n_rows, n_cols):
    n_idx = pl.program_id(0)
    v_idx = pl.program_id(1)
    tn, tv = logits_ref.shape

    @pl.when(v_idx == 0)
    def _init():
        m_sc[...] = jnp.full_like(m_sc, -jnp.inf)
        s_sc[...] = jnp.zeros_like(s_sc)
        t_sc[...] = jnp.zeros_like(t_sc)

    logits = logits_ref[...].astype(jnp.float32)              # (TN, TV) f32
    labels = labels_ref[...]                                   # (TN, 1)  i32

    # Lane iota built once; reused by the tail mask and the label gather.
    col = lax.broadcasted_iota(jnp.int32, (1, tv), 1)

    # ---- in-kernel ragged-tail handling (replaces the wrapper-side pad) ----
    if n_cols % tv != 0:
        # OOB vocab columns of the last V tile: exclude from the softmax.
        logits = jnp.where(col < (n_cols - v_idx * tv), logits,
                           jnp.finfo(jnp.float32).min)
    if n_rows % tn != 0:
        # OOB rows of the last N tile hold undefined data (possibly NaN):
        # replace with a finite constant; the row is invalidated by index below.
        row_ok = lax.broadcasted_iota(jnp.int32, (tn, 1), 0) < (n_rows - n_idx * tn)
        logits = jnp.where(row_ok, logits, 0.0)

    # ---- online logsumexp update across the vocab (reduction) axis ----
    tile_max = jnp.max(logits, axis=-1, keepdims=True)         # (TN, 1)
    m_new = jnp.maximum(m_sc[...], tile_max)
    s_sc[...] = (s_sc[...] * jnp.exp(m_sc[...] - m_new)
                 + jnp.sum(jnp.exp(logits - m_new), axis=-1, keepdims=True))
    m_sc[...] = m_new

    # ---- fused label-logit gather: shift the labels, not the tile iota ----
    shifted = labels - v_idx * tv                               # (TN, 1)
    t_sc[...] += jnp.sum(jnp.where(col == shifted, logits, 0.0),
                         axis=-1, keepdims=True)

    # ---- finalize once per N tile ----
    @pl.when(v_idx == pl.num_programs(1) - 1)
    def _finalize():
        lse = jnp.log(s_sc[...]) + m_sc[...]                    # (TN, 1)
        valid = labels != ignore_idx
        if n_rows % tn != 0:
            row_ok2 = (lax.broadcasted_iota(jnp.int32, (tn, 1), 0)
                       < (n_rows - n_idx * tn))
            valid = jnp.logical_and(valid, row_ok2)
        per_row = (lse - t_sc[...]) * valid.astype(jnp.float32)
        loss_ref[...] = jnp.full(loss_ref.shape, jnp.sum(per_row), jnp.float32)


# ---------------------------------------------------------------------------
# Kernel 2: matching-the-blanks BCE (tiny B x B gram, single shot).
# Launch-overhead dominated (B~4, E~32); kept as-is per perf review.
# ---------------------------------------------------------------------------
def _blank_loss_kernel(f_ref, lbl_row_ref, lbl_col_ref, out_ref):
    f = f_ref[...].astype(jnp.float32)                          # (B, E)
    lbl_row = lbl_row_ref[...]                                  # (B, 1) f32
    lbl_col = lbl_col_ref[...]                                  # (1, B) f32
    b = f.shape[0]

    # Gram matrix of pairwise dot products: G[i, j] = f_i . f_j
    gram = lax.dot_general(f, f, (((1,), (1,)), ((), ())),
                           preferred_element_type=jnp.float32)  # (B, B)

    pos_i = (lbl_row == 1.0).astype(jnp.float32)                # (B, 1)
    pos_j = (lbl_col == 1.0).astype(jnp.float32)                # (1, B)
    neg_j = (lbl_col == 0.0).astype(jnp.float32)                # (1, B)

    ii = lax.broadcasted_iota(jnp.int32, (b, b), 0)
    jj = lax.broadcasted_iota(jnp.int32, (b, b), 1)
    upper = (ii < jj).astype(jnp.float32)                       # strict upper tri

    def softplus(x):  # BCE(sigmoid(g),1)=softplus(-g); BCE(.,0)=softplus(g)
        return jnp.maximum(x, 0.0) + jnp.log1p(jnp.exp(-jnp.abs(x)))

    pos_term = jnp.sum((pos_i * pos_j * upper) * softplus(-gram))
    neg_term = jnp.sum((pos_i * neg_j) * softplus(gram))

    # pair count from scalar label counts: C(p,2) + p*n
    p = jnp.sum(pos_j)
    n = jnp.sum(neg_j)
    n_pairs = p * (p - 1.0) * 0.5 + p * n
    out_ref[0, 0] = (pos_term + neg_term) / jnp.maximum(n_pairs, 1.0)


# ---------------------------------------------------------------------------
# Wrapper
# ---------------------------------------------------------------------------
def two_headed_loss(lm_logits, lm_labels, blank_logits, blank_labels,
                    lm_ignore_idx, *, tile_n=256, tile_v=4096,
                    logits_buffers=2):
    """lm_logits: (N, V) float — keep bf16 in HBM if possible (kernel casts to
    f32 per tile; bf16 halves the DMA bytes of this memory-bound kernel).
    lm_labels: (N,) int class ids, blank_logits: (B, E), blank_labels: (B,)."""
    N, V = lm_logits.shape
    B, E = blank_logits.shape

    # ---- tile selection (no wrapper-side padding of logits) ----
    tile_n = max(8, (int(tile_n) // 8) * 8)
    tile_v = max(128, (int(tile_v) // 128) * 128)
    # Cap tn so the "parallel" N axis yields >= 2 tiles (v7x 2-TC balance).
    half_n = _round_up(_cdiv(N, 2), 8)
    tn = min(tile_n, max(8, half_n))
    # Full-vocab tile when it fits, otherwise a lane-aligned slice of V.
    tv = V if V <= tile_v else tile_v

    grid = (_cdiv(N, tn), _cdiv(V, tv))
    labels2d = lm_labels.astype(jnp.int32).reshape(N, 1)
    in_bytes = jnp.dtype(lm_logits.dtype).itemsize

    # VMEM budget: pipelined input buffers + f32 temporaries + headroom,
    # clamped to 48 MiB so it fits v7x's 64 MiB with Mosaic scratch headroom.
    working = int(logits_buffers) * tn * tv * in_bytes
    temps = 6 * tn * tv * 4
    vmem_limit = int(min(48 * 1024 * 1024,
                         max(32 * 1024 * 1024, working + temps + (2 << 20))))

    if int(logits_buffers) != 2:
        logits_spec = pl.BlockSpec((tn, tv), lambda n, v: (n, v),
                                   pipeline_mode=pl.Buffered(int(logits_buffers)))
    else:
        logits_spec = pl.BlockSpec((tn, tv), lambda n, v: (n, v))

    kernel = functools.partial(_lm_ce_partial_kernel,
                               ignore_idx=int(lm_ignore_idx),
                               n_rows=int(N), n_cols=int(V))

    cost = pl.CostEstimate(flops=5 * N * V,
                           transcendentals=N * V,
                           bytes_accessed=N * V * in_bytes + N * 4)

    loss_part = pl.pallas_call(
        kernel,
        out_shape=jax.ShapeDtypeStruct((grid[0], 8, 128), jnp.float32),
        grid_spec=pltpu.PrefetchScalarGridSpec(
            num_scalar_prefetch=0,
            grid=grid,
            in_specs=[
                logits_spec,
                pl.BlockSpec((tn, 1), lambda n, v: (n, 0)),
            ],
            out_specs=pl.BlockSpec((1, 8, 128), lambda n, v: (n, 0, 0)),
            scratch_shapes=[pltpu.VMEM((tn, 1), jnp.float32)] * 3,
        ),
        compiler_params=pltpu.CompilerParams(
            dimension_semantics=("parallel", "arbitrary"),
            vmem_limit_bytes=vmem_limit),
        cost_estimate=cost,
    )(lm_logits, labels2d)

    # Valid-row count computed in the wrapper (one fewer kernel output/DMA).
    n_valid = jnp.sum((lm_labels != lm_ignore_idx).astype(jnp.float32))
    lm_loss = jnp.sum(loss_part[:, 0, 0]) / jnp.maximum(n_valid, 1.0)

    # ---- matching-the-blanks BCE (tiny, single shot) ----
    bl_row = blank_labels.reshape(B, 1).astype(jnp.float32)
    bl_col = blank_labels.reshape(1, B).astype(jnp.float32)
    blank_loss = pl.pallas_call(
        _blank_loss_kernel,
        out_shape=jax.ShapeDtypeStruct((1, 1), jnp.float32),
        in_specs=[pl.BlockSpec(memory_space=pltpu.MemorySpace.VMEM)] * 3,
        out_specs=pl.BlockSpec(memory_space=pltpu.MemorySpace.SMEM),
    )(blank_logits, bl_row, bl_col)[0, 0]

    return lm_loss + blank_loss


# ---------------------------------------------------------------------------
# Reference (numpy/itertools mirror of the PyTorch module) — for verification.
# ---------------------------------------------------------------------------
def _numpy_reference(lm_logits, lm_labels, blank_logits, blank_labels, ignore_idx):
    lm_logits = np.asarray(lm_logits, np.float64)
    lm_labels = np.asarray(lm_labels)
    blank_logits = np.asarray(blank_logits, np.float64)
    blank_labels = np.asarray(blank_labels)

    m = lm_logits.max(axis=-1, keepdims=True)
    lse = np.log(np.exp(lm_logits - m).sum(axis=-1)) + m[:, 0]
    valid = lm_labels != ignore_idx
    nll = lse[valid] - lm_logits[valid, lm_labels[valid]]
    lm_loss = nll.mean()

    def sigmoid(x):
        return 1.0 / (1.0 + np.exp(-x))

    pos_idxs = [i for i, l in enumerate(blank_labels.tolist()) if l == 1]
    neg_idxs = [i for i, l in enumerate(blank_labels.tolist()) if l == 0]
    probs, targets = [], []
    for p1, p2 in combinations(pos_idxs, 2):
        probs.append(sigmoid(np.dot(blank_logits[p1], blank_logits[p2])))
        targets.append(1.0)
    for p in pos_idxs:
        for ng in neg_idxs:
            probs.append(sigmoid(np.dot(blank_logits[p], blank_logits[ng])))
            targets.append(0.0)
    probs = np.array(probs)
    targets = np.array(targets)
    bce = -(targets * np.log(probs) + (1.0 - targets) * np.log(1.0 - probs)).mean()
    return lm_loss + bce


if __name__ == "__main__":
    key = jax.random.PRNGKey(0)
    k1, k2, k3 = jax.random.split(key, 3)

    LM_IGNORE_IDX = -1
    N, V = 14, 500       # deliberately not tile-aligned -> exercises in-kernel masks
    B, E = 4, 32         # batch, blank-embedding size

    lm_logits = jax.random.normal(k1, (N, V), dtype=jnp.float32)
    lm_labels = jax.random.randint(k2, (N,), 0, V, dtype=jnp.int32)
    lm_labels = lm_labels.at[3].set(LM_IGNORE_IDX)   # exercise ignore_index
    blank_logits = jax.random.normal(k3, (B, E), dtype=jnp.float32) * 0.5
    blank_labels = jnp.array([1, 1, 0, 0], dtype=jnp.int32)  # >=2 pos, >=1 neg

    ref = _numpy_reference(np.asarray(lm_logits), np.asarray(lm_labels),
                           np.asarray(blank_logits), np.asarray(blank_labels),
                           LM_IGNORE_IDX)

    # (a) small tiles -> multi-tile grid with ragged tails on BOTH axes
    #     (exercises the new in-kernel masking that replaced jnp.pad).
    t1 = jax.block_until_ready(
        two_headed_loss(lm_logits, lm_labels, blank_logits, blank_labels,
                        LM_IGNORE_IDX, tile_n=8, tile_v=128))
    assert np.allclose(np.asarray(t1), ref, rtol=1e-4, atol=1e-4), (t1, ref)

    # (b) production defaults: full-vocab tile + megacore-balanced N tiling.
    t2 = jax.block_until_ready(
        two_headed_loss(lm_logits, lm_labels, blank_logits, blank_labels,
                        LM_IGNORE_IDX))
    assert np.allclose(np.asarray(t2), ref, rtol=1e-4, atol=1e-4), (t2, ref)

    # (c) bf16 logits in HBM (recommended caller contract; kernel casts per tile).
    lm_bf16 = lm_logits.astype(jnp.bfloat16)
    ref_bf16 = _numpy_reference(np.asarray(lm_bf16.astype(jnp.float32)),
                                np.asarray(lm_labels), np.asarray(blank_logits),
                                np.asarray(blank_labels), LM_IGNORE_IDX)
    t3 = jax.block_until_ready(
        two_headed_loss(lm_bf16, lm_labels, blank_logits, blank_labels,
                        LM_IGNORE_IDX, tile_n=8, tile_v=128))
    assert np.allclose(np.asarray(t3), ref_bf16, rtol=1e-4, atol=1e-4), (t3, ref_bf16)

    print("KERNEL_OK")
</pallas_src>

<mosaic_0001>
module attributes {stable_mosaic.version = 11 : i64} {
  func.func @_lm_ce_partial_kernel(%arg0: i32, %arg1: i32, %arg2: memref<8x128xf32, #tpu.memory_space<vmem>>, %arg3: memref<8x1xi32, #tpu.memory_space<vmem>>, %arg4: memref<1x8x128xf32, #tpu.memory_space<vmem>>, %arg5: memref<8x1xf32, #tpu.memory_space<vmem>>, %arg6: memref<8x1xf32, #tpu.memory_space<vmem>>, %arg7: memref<8x1xf32, #tpu.memory_space<vmem>>) attributes {dimension_semantics = [#tpu.dimension_semantics<parallel>, #tpu.dimension_semantics<arbitrary>], iteration_bounds = array<i64: 2, 4>, scalar_prefetch = 0 : i64, scratch_operands = 3 : i64, tpu.core_type = #tpu.core_type<tc>, window_params = [{transform_indices = @transform_0, window_bounds = array<i64: 8, 128>}, {transform_indices = @transform_1, window_bounds = array<i64: 8, 1>}, {transform_indices = @transform_2, window_bounds = array<i64: 1, 8, 128>}]} {
    %c0_i32 = arith.constant 0 : i32
    %0 = arith.cmpi eq, %arg1, %c0_i32 : i32
    %1 = arith.extui %0 : i1 to i32
    %c0_i32_0 = arith.constant 0 : i32
    %2 = arith.cmpi ne, %1, %c0_i32_0 : i32
    scf.if %2 {
      %cst_25 = arith.constant 0xFF800000 : f32
      %56 = vector.broadcast %cst_25 : f32 to vector<8x1xf32>
      %c0_26 = arith.constant 0 : index
      %c0_27 = arith.constant 0 : index
      %57 = vector.load %arg5[%c0_26, %c0_27] : memref<8x1xf32, #tpu.memory_space<vmem>>, vector<8x1xf32>
      tpu.vector_store %arg5[%c0_26, %c0_27], %56 {strides = array<i32>} : memref<8x1xf32, #tpu.memory_space<vmem>>, vector<8x1xf32>,
      %cst_28 = arith.constant 0.000000e+00 : f32
      %58 = vector.broadcast %cst_28 : f32 to vector<8x1xf32>
      %c0_29 = arith.constant 0 : index
      %c0_30 = arith.constant 0 : index
      %59 = vector.load %arg6[%c0_29, %c0_30] : memref<8x1xf32, #tpu.memory_space<vmem>>, vector<8x1xf32>
      tpu.vector_store %arg6[%c0_29, %c0_30], %58 {strides = array<i32>} : memref<8x1xf32, #tpu.memory_space<vmem>>, vector<8x1xf32>,
      %cst_31 = arith.constant 0.000000e+00 : f32
      %60 = vector.broadcast %cst_31 : f32 to vector<8x1xf32>
      %c0_32 = arith.constant 0 : index
      %c0_33 = arith.constant 0 : index
      %61 = vector.load %arg7[%c0_32, %c0_33] : memref<8x1xf32, #tpu.memory_space<vmem>>, vector<8x1xf32>
      tpu.vector_store %arg7[%c0_32, %c0_33], %60 {strides = array<i32>} : memref<8x1xf32, #tpu.memory_space<vmem>>, vector<8x1xf32>,
    } else {
    }
    %c0 = arith.constant 0 : index
    %c0_1 = arith.constant 0 : index
    %3 = vector.load %arg2[%c0, %c0_1] : memref<8x128xf32, #tpu.memory_space<vmem>>, vector<8x128xf32>
    %c0_2 = arith.constant 0 : index
    %c0_3 = arith.constant 0 : index
    %4 = vector.load %arg3[%c0_2, %c0_3] : memref<8x1xi32, #tpu.memory_space<vmem>>, vector<8x1xi32>
    %5 = tpu.iota {dimensions = array<i32: 1>} : vector<1x128xi32>
    %c128_i32 = arith.constant 128 : i32
    %6 = arith.muli %arg1, %c128_i32 : i32
    %c500_i32 = arith.constant 500 : i32
    %7 = arith.subi %c500_i32, %6 : i32
    %8 = vector.broadcast %7 : i32 to vector<1x128xi32>
    %9 = arith.cmpi slt, %5, %8 : vector<1x128xi32>
    %cst = arith.constant -3.40282347E+38 : f32
    %10 = vector.shape_cast %9 : vector<1x128xi1> to vector<1x128xi1>
    %11 = vector.broadcast %10 : vector<1x128xi1> to vector<8x128xi1>
    %12 = vector.broadcast %cst : f32 to vector<8x128xf32>
    %13 = arith.select %11, %3, %12 : vector<8x128xi1>, vector<8x128xf32>
    %14 = tpu.iota {dimensions = array<i32: 0>} : vector<8x1xi32>
    %c8_i32 = arith.constant 8 : i32
    %15 = arith.muli %arg0, %c8_i32 : i32
    %c14_i32 = arith.constant 14 : i32
    %16 = arith.subi %c14_i32, %15 : i32
    %17 = vector.broadcast %16 : i32 to vector<8x1xi32>
    %18 = arith.cmpi slt, %14, %17 : vector<8x1xi32>
    %cst_4 = arith.constant 0.000000e+00 : f32
    %19 = vector.shape_cast %18 : vector<8x1xi1> to vector<8x1xi1>
    %20 = vector.broadcast %19 : vector<8x1xi1> to vector<8x128xi1>
    %21 = vector.broadcast %cst_4 : f32 to vector<8x128xf32>
    %22 = arith.select %20, %13, %21 : vector<8x128xi1>, vector<8x128xf32>
    %cst_5 = arith.constant dense<0xFF800000> : vector<8xf32>
    %23 = vector.multi_reduction <maximumf>, %22, %cst_5 [1] : vector<8x128xf32> to vector<8xf32>
    %24 = vector.shape_cast %23 : vector<8xf32> to vector<8x1xf32>
    %c0_6 = arith.constant 0 : index
    %c0_7 = arith.constant 0 : index
    %25 = vector.load %arg5[%c0_6, %c0_7] : memref<8x1xf32, #tpu.memory_space<vmem>>, vector<8x1xf32>
    %26 = arith.maximumf %25, %24 : vector<8x1xf32>
    %c0_8 = arith.constant 0 : index
    %c0_9 = arith.constant 0 : index
    %27 = vector.load %arg6[%c0_8, %c0_9] : memref<8x1xf32, #tpu.memory_space<vmem>>, vector<8x1xf32>
    %c0_10 = arith.constant 0 : index
    %c0_11 = arith.constant 0 : index
    %28 = vector.load %arg5[%c0_10, %c0_11] : memref<8x1xf32, #tpu.memory_space<vmem>>, vector<8x1xf32>
    %29 = arith.subf %28, %26 : vector<8x1xf32>
    %30 = math.exp %29 : vector<8x1xf32>
    %31 = arith.mulf %27, %30 : vector<8x1xf32>
    %32 = vector.broadcast %26 : vector<8x1xf32> to vector<8x128xf32>
    %33 = arith.subf %22, %32 : vector<8x128xf32>
    %34 = math.exp %33 : vector<8x128xf32>
    %cst_12 = arith.constant dense<0.000000e+00> : vector<8xf32>
    %35 = vector.multi_reduction <add>, %34, %cst_12 [1] : vector<8x128xf32> to vector<8xf32>
    %36 = vector.shape_cast %35 : vector<8xf32> to vector<8x1xf32>
    %37 = arith.addf %31, %36 : vector<8x1xf32>
    %c0_13 = arith.constant 0 : index
    %c0_14 = arith.constant 0 : index
    %38 = vector.load %arg6[%c0_13, %c0_14] : memref<8x1xf32, #tpu.memory_space<vmem>>, vector<8x1xf32>
    tpu.vector_store %arg6[%c0_13, %c0_14], %37 {strides = array<i32>} : memref<8x1xf32, #tpu.memory_space<vmem>>, vector<8x1xf32>,
    %c0_15 = arith.constant 0 : index
    %c0_16 = arith.constant 0 : index
    %39 = vector.load %arg5[%c0_15, %c0_16] : memref<8x1xf32, #tpu.memory_space<vmem>>, vector<8x1xf32>
    tpu.vector_store %arg5[%c0_15, %c0_16], %26 {strides = array<i32>} : memref<8x1xf32, #tpu.memory_space<vmem>>, vector<8x1xf32>,
    %c128_i32_17 = arith.constant 128 : i32
    %40 = arith.muli %arg1, %c128_i32_17 : i32
    %41 = vector.broadcast %40 : i32 to vector<8x1xi32>
    %42 = arith.subi %4, %41 : vector<8x1xi32>
    %c0_18 = arith.constant 0 : index
    %c0_19 = arith.constant 0 : index
    %43 = vector.load %arg7[%c0_18, %c0_19] : memref<8x1xf32, #tpu.memory_space<vmem>>, vector<8x1xf32>
    %44 = vector.broadcast %5 : vector<1x128xi32> to vector<8x128xi32>
    %45 = vector.broadcast %42 : vector<8x1xi32> to vector<8x128xi32>
    %46 = arith.cmpi eq, %44, %45 : vector<8x128xi32>
    %cst_20 = arith.constant 0.000000e+00 : f32
    %47 = vector.broadcast %cst_20 : f32 to vector<8x128xf32>
    %48 = arith.select %46, %22, %47 : vector<8x128xi1>, vector<8x128xf32>
    %cst_21 = arith.constant dense<0.000000e+00> : vector<8xf32>
    %49 = vector.multi_reduction <add>, %48, %cst_21 [1] : vector<8x128xf32> to vector<8xf32>
    %50 = vector.shape_cast %49 : vector<8xf32> to vector<8x1xf32>
    %51 = arith.addf %43, %50 : vector<8x1xf32>
    %c0_22 = arith.constant 0 : index
    %c0_23 = arith.constant 0 : index
    %52 = vector.load %arg7[%c0_22, %c0_23] : memref<8x1xf32, #tpu.memory_space<vmem>>, vector<8x1xf32>
    tpu.vector_store %arg7[%c0_22, %c0_23], %51 {strides = array<i32>} : memref<8x1xf32, #tpu.memory_space<vmem>>, vector<8x1xf32>,
    %c3_i32 = arith.constant 3 : i32
    %53 = arith.cmpi eq, %arg1, %c3_i32 : i32
    %54 = arith.extui %53 : i1 to i32
    %c0_i32_24 = arith.constant 0 : i32
    %55 = arith.cmpi ne, %54, %c0_i32_24 : i32
    scf.if %55 {
      %c0_25 = arith.constant 0 : index
      %c0_26 = arith.constant 0 : index
      %56 = vector.load %arg6[%c0_25, %c0_26] : memref<8x1xf32, #tpu.memory_space<vmem>>, vector<8x1xf32>
      %57 = math.log %56 : vector<8x1xf32>
      %c0_27 = arith.constant 0 : index
      %c0_28 = arith.constant 0 : index
      %58 = vector.load %arg5[%c0_27, %c0_28] : memref<8x1xf32, #tpu.memory_space<vmem>>, vector<8x1xf32>
      %59 = arith.addf %57, %58 : vector<8x1xf32>
      %c-1_i32 = arith.constant -1 : i32
      %60 = vector.broadcast %c-1_i32 : i32 to vector<8x1xi32>
      %61 = arith.cmpi ne, %4, %60 : vector<8x1xi32>
      %62 = tpu.iota {dimensions = array<i32: 0>} : vector<8x1xi32>
      %c8_i32_29 = arith.constant 8 : i32
      %63 = arith.muli %arg0, %c8_i32_29 : i32
      %c14_i32_30 = arith.constant 14 : i32
      %64 = arith.subi %c14_i32_30, %63 : i32
      %65 = vector.broadcast %64 : i32 to vector<8x1xi32>
      %66 = arith.cmpi slt, %62, %65 : vector<8x1xi32>
      %67 = arith.andi %61, %66 : vector<8x1xi1>
      %c0_31 = arith.constant 0 : index
      %c0_32 = arith.constant 0 : index
      %68 = vector.load %arg7[%c0_31, %c0_32] : memref<8x1xf32, #tpu.memory_space<vmem>>, vector<8x1xf32>
      %69 = arith.subf %59, %68 : vector<8x1xf32>
      %70 = arith.extui %67 : vector<8x1xi1> to vector<8x1xi32>
      %71 = arith.sitofp %70 : vector<8x1xi32> to vector<8x1xf32>
      %72 = arith.mulf %69, %71 : vector<8x1xf32>
      %73 = vector.shape_cast %72 : vector<8x1xf32> to vector<1x8x1xf32>
      %cst_33 = arith.constant dense<0.000000e+00> : vector<1xf32>
      %74 = vector.multi_reduction <add>, %73, %cst_33 [1, 2] : vector<1x8x1xf32> to vector<1xf32>
      %75 = vector.shape_cast %74 : vector<1xf32> to vector<1x1x1xf32>
      %76 = vector.extract %75[0, 0, 0] : f32 from vector<1x1x1xf32>
      %77 = vector.broadcast %76 : f32 to vector<1x8x128xf32>
      %c0_34 = arith.constant 0 : index
      %c0_35 = arith.constant 0 : index
      %c0_36 = arith.constant 0 : index
      %78 = vector.load %arg4[%c0_34, %c0_35, %c0_36] : memref<1x8x128xf32, #tpu.memory_space<vmem>>, vector<1x8x128xf32>
      tpu.vector_store %arg4[%c0_34, %c0_35, %c0_36], %77 {strides = array<i32>} : memref<1x8x128xf32, #tpu.memory_space<vmem>>, vector<1x8x128xf32>,
    } else {
    }
    return
  }
  func.func @transform_0(%arg0: i32, %arg1: i32) -> (i32, i32) {
    %c0_i32 = arith.constant 0 : i32
    return %arg0, %arg1 : i32, i32
  }
  func.func @transform_1(%arg0: i32, %arg1: i32) -> (i32, i32) {
    %c0_i32 = arith.constant 0 : i32
    %c0_i32_0 = arith.constant 0 : i32
    return %arg0, %c0_i32 : i32, i32
  }
  func.func @transform_2(%arg0: i32, %arg1: i32) -> (i32, i32, i32) {
    %c0_i32 = arith.constant 0 : i32
    %c0_i32_0 = arith.constant 0 : i32
    %c0_i32_1 = arith.constant 0 : i32
    return %arg0, %c0_i32, %c0_i32_0 : i32, i32, i32
  }
}

</mosaic_0001>

<llo_original>
// kernel: tpu_custom_call.1
$region0: #{tpu_custom_call.1}
  #allocation0 [shape = 'u32[]', space=smem, size = 0x4, offset = 0x4, fixed_abs, tag = 'smem constant byte address 0x4 - core index']
  #allocation1 [shape = 'u32[72,128]{1,0:T(1,128)}', space=vmem, size = 0x9000, scoped, tag = 'internal scratch']
  #allocation2 [shape = 'f32[8,1]{1,0:T(8,128)}', space=vmem, size = 0x1000, scoped, tag = 'scratch operand']
  #allocation3 [shape = 'f32[8,1]{1,0:T(8,128)}', space=vmem, size = 0x1000, scoped, tag = 'scratch operand']
  #allocation4 [shape = 'f32[8,1]{1,0:T(8,128)}', space=vmem, size = 0x1000, scoped, tag = 'scratch operand']
  %s0 = inlined_call_operand.hbm [shape: f32[14,500], index: 0, kind: input, shape index: {}]
  %s1 = inlined_call_operand.vmem [shape: s32[14,1], index: 1, kind: input, shape index: {}]
  %s2 = inlined_call_operand.hbm [shape: f32[2,8,128], index: 2, kind: output, shape index: {}]
  %s3 = sld [smem:[#allocation0]]
  $region53: #{tpu_custom_call.1} parent=0
    _
  %s5 = ssub.s32 1, %s3
  %s6 = scalar_select 0, %s5, %s3
  $region1: #{tpu_custom_call.1} parent=0
    #allocation5 [shape = 'u8[8192]{0}', space=vmem, size = 0x2000, scoped, tag = 'input window, operand 0']
    #allocation6 [shape = 's32[2]{0}', space=sflag, size = 0x8, scoped, tag = 'scoped memory for tpu_custom_call.1']
    #allocation7 [shape = 's32[2]{0}', space=sflag, size = 0x8, scoped, tag = 'scoped memory for tpu_custom_call.1']
    #allocation8 [shape = 'u8[8192]{0}', space=vmem, size = 0x2000, scoped, tag = 'output window, operand 0']
    %7 = vsyncpa [#allocation6], 0
    %s8 = scalar_lea.sflag [#allocation6], 1
    %9 = vsyncpa %s8, 0
    %10 = vsyncpa [#allocation7], 0
    %s11 = scalar_lea.sflag [#allocation7], 1
    %12 = vsyncpa %s11, 0
    loop: start=0, step=1, limit=10
    $region2: #{tpu_custom_call.1} parent=1 // loop_pre_header
      _
    $region3: #{tpu_custom_call.1} parent=1 // loop_header
      %s14 = sphi 0, %s18
      %p15 = scmp.ge.s32.totalorder %s14, 10
      %s21 = sphi 0, %s33
      %s22 = sphi 0, %s29
      %s23 = sphi 0, %s21
      %s24 = sphi 0, %s22
      %s25 = sphi 0, %s23
      %s26 = sphi 0, %s24
      %s38 = sphi 0, %s40
      %s41 = sphi 0, %s38
      %s42 = sphi 0, %s41
      %s58 = sphi 0, %s42
      %s64 = sphi 0, %s66
      %s67 = sphi 0, %s64
      %s68 = sphi 0, %s67
      %s84 = sphi 0, %s68
      %s90 = sphi 0, %s92
      %s93 = sphi 0, %s90
      %s94 = sphi 0, %s93
      %s110 = sphi 0, %s94
    $region4: #{tpu_custom_call.1} parent=1 // loop_header_branch
      %17 = sbr.rel (%p15) target = $region8
    $region5: #{tpu_custom_call.1} parent=1 // loop_body
      %s19 = ssub.s32 %s14, 1
      %s20 = ssub.s32 %s14, 2
      %s27 = sadd.s32 1, %s22
      %p28 = scmp.ge.s32.totalorder %s27, 4
      %s29 = scalar_select %p28, 0, %s27
      %s30 = sadd.s32 1, %s21
      %s31 = scalar_select %p28, %s30, %s21
      %p32 = scmp.ge.s32.totalorder %s31, 2
      %s33 = scalar_select %p32, 0, %s31
      %s34 = ssub.s32 %s21, %s33
      %s35 = ssub.s32 %s22, %s29
      %s36 = sor.u32 %s34, %s35
      %p37 = scmp.eq.s32.totalorder %s36, 0
      %s39 = sadd.s32 %s38, 1
      %s40 = scalar_select %p37, %s38, %s39
      %p43 = pneg %p37
      %p44 = scmp.eq.s32.totalorder %s14, 7
      %p45 = por %p43, %p44
      %p46 = scmp.ne.s32.totalorder %s38, %s41
      %p47 = scmp.eq.s32.totalorder %s14, 0
      %p48 = por %p46, %p47
      %p49 = scmp.ne.s32.totalorder %s38, %s41
      %p50 = scmp.eq.s32.totalorder %s19, 7
      %p51 = por %p49, %p50
      %p52 = scmp.ne.s32.totalorder %s41, %s42
      %p53 = scmp.eq.s32.totalorder %s19, 0
      %p54 = por %p52, %p53
      %p55 = scmp.ne.s32.totalorder %s41, %s42
      %p56 = scmp.eq.s32.totalorder %s20, 7
      %p57 = por %p55, %p56
      %p59 = scmp.ne.s32.totalorder %s42, %s58
      %p60 = scmp.eq.s32.totalorder %s20, 0
      %p61 = por %p59, %p60
      %s62 = ssub.s32 %s21, %s33
      %p63 = scmp.eq.s32.totalorder %s62, 0
      %s65 = sadd.s32 %s64, 1
      %s66 = scalar_select %p63, %s64, %s65
      %p69 = pneg %p63
      %p70 = scmp.eq.s32.totalorder %s14, 7
      %p71 = por %p69, %p70
      %p72 = scmp.ne.s32.totalorder %s64, %s67
      %p73 = scmp.eq.s32.totalorder %s14, 0
      %p74 = por %p72, %p73
      %p75 = scmp.ne.s32.totalorder %s64, %s67
      %p76 = scmp.eq.s32.totalorder %s19, 7
      %p77 = por %p75, %p76
      %p78 = scmp.ne.s32.totalorder %s67, %s68
      %p79 = scmp.eq.s32.totalorder %s19, 0
      %p80 = por %p78, %p79
      %p81 = scmp.ne.s32.totalorder %s67, %s68
      %p82 = scmp.eq.s32.totalorder %s20, 7
      %p83 = por %p81, %p82
      %p85 = scmp.ne.s32.totalorder %s68, %s84
      %p86 = scmp.eq.s32.totalorder %s20, 0
      %p87 = por %p85, %p86
      %s88 = ssub.s32 %s21, %s33
      %p89 = scmp.eq.s32.totalorder %s88, 0
      %s91 = sadd.s32 %s90, 1
      %s92 = scalar_select %p89, %s90, %s91
      %p95 = pneg %p89
      %p96 = scmp.eq.s32.totalorder %s14, 7
      %p97 = por %p95, %p96
      %p98 = scmp.ne.s32.totalorder %s90, %s93
      %p99 = scmp.eq.s32.totalorder %s14, 0
      %p100 = por %p98, %p99
      %p101 = scmp.ne.s32.totalorder %s90, %s93
      %p102 = scmp.eq.s32.totalorder %s19, 7
      %p103 = por %p101, %p102
      %p104 = scmp.ne.s32.totalorder %s93, %s94
      %p105 = scmp.eq.s32.totalorder %s19, 0
      %p106 = por %p104, %p105
      %p107 = scmp.ne.s32.totalorder %s93, %s94
      %p108 = scmp.eq.s32.totalorder %s20, 7
      %p109 = por %p107, %p108
      %p111 = scmp.ne.s32.totalorder %s94, %s110
      %p112 = scmp.eq.s32.totalorder %s20, 0
      %p113 = por %p111, %p112
      %p114 = scmp.le.s32.totalorder 1, %s14
      %p115 = scmp.lt.s32.totalorder %s14, 9
      %p116 = pnand %p114, %p115
      %p117 = pneg %p116
      // Predicated region
      $region9: #{tpu_custom_call.1} parent=5 // pred_check
        _
      $region10: #{tpu_custom_call.1} parent=5 // pred_check_branch
        %119 = sbr.rel (%p116) target = $region12
      $region11: #{tpu_custom_call.1} parent=5 // pred_region
        %s120 = ssub.s32 %s14, 1
      $region12: #{tpu_custom_call.1} parent=5 // pred_fallthru
        _
      %p121 = scmp.lt.s32.totalorder %s14, 8
      // Predicated region
      $region13: #{tpu_custom_call.1} parent=5 // pred_check
        %p122 = pneg %p121
      $region14: #{tpu_custom_call.1} parent=5 // pred_check_branch
        %124 = sbr.rel (%p122) target = $region16
      $region15: #{tpu_custom_call.1} parent=5 // pred_region
        // Predicated region
        $region17: #{tpu_custom_call.1} parent=15 // pred_check
          %p125 = pneg %p48
        $region18: #{tpu_custom_call.1} parent=15 // pred_check_branch
          %127 = sbr.rel (%p125) target = $region20
        $region19: #{tpu_custom_call.1} parent=15 // pred_region
          %s128 = sand.u32 %s38, 1
          %s129 = scalar_lea.sflag [#allocation6], %s128
          %s130 = sand.u32 %s38, 1
          %s131 = smul.addr %s130, 8
          %s132 = scalar_lea.vmem [#allocation5], %s131
          %134 = vsyncadd %s129, 0
          %s135 = smul.addr %s21, 4
          %s136 = sadd.s32 %s22, %s135
          %s137 = smul.addr %s136, 8
          %s138 = scalar_lea.hbm %s0, %s137
          %s140 = sshll.u32 %s138, 4
          %s141 = int_to_ptr.hbm [resolvable:$true] %s140
          %s142 = sshll.u32 %s132, 4
          %s143 = int_to_ptr.vmem [resolvable:$true] %s142
          %145 = dma.hbm_to_vmem [thread:$0]  %s141, 128, %s143, %s129
        $region20: #{tpu_custom_call.1} parent=15 // pred_fallthru
          _
        // Predicated region
        $region21: #{tpu_custom_call.1} parent=15 // pred_check
          %p146 = pneg %p74
        $region22: #{tpu_custom_call.1} parent=15 // pred_check_branch
          %148 = sbr.rel (%p146) target = $region24
        $region23: #{tpu_custom_call.1} parent=15 // pred_region
          %p149 = scmp.lt.s32.totalorder %s21, 1
          %s150 = scalar_select %p149, %s21, 1
          %s151 = smul.addr %s150, 8
          %s152 = scalar_lea.vmem %s1, %s151
        $region24: #{tpu_custom_call.1} parent=15 // pred_fallthru
          _
      $region16: #{tpu_custom_call.1} parent=5 // pred_fallthru
        _
      %p153 = scmp.le.s32.totalorder 1, %s14
      %p154 = scmp.lt.s32.totalorder %s14, 9
      %p155 = pnand %p153, %p154
      %p156 = pneg %p155
      // Predicated region
      $region25: #{tpu_custom_call.1} parent=5 // pred_check
        _
      $region26: #{tpu_custom_call.1} parent=5 // pred_check_branch
        %158 = sbr.rel (%p155) target = $region28
      $region27: #{tpu_custom_call.1} parent=5 // pred_region
        %s159 = ssub.s32 %s14, 1
        %s160 = sand.u32 %s41, 1
        %s161 = scalar_lea.sflag [#allocation6], %s160
        %s162 = sand.u32 %s41, 1
        %s163 = smul.addr %s162, 8
        %s164 = scalar_lea.vmem [#allocation5], %s163
        // Predicated region
        $region29: #{tpu_custom_call.1} parent=27 // pred_check
          %p165 = pneg %p54
        $region30: #{tpu_custom_call.1} parent=27 // pred_check_branch
          %167 = sbr.rel (%p165) target = $region32
        $region31: #{tpu_custom_call.1} parent=27 // pred_region
          %169 = dma.done %s161, 128
        $region32: #{tpu_custom_call.1} parent=27 // pred_fallthru
          _
        %s170 = sand.u32 %s41, 1
        %s171 = scalar_lea.sflag [#allocation6], %s170
        %s172 = sand.u32 %s41, 1
        %s173 = smul.addr %s172, 8
        %s174 = scalar_lea.vmem [#allocation5], %s173
        %p175 = pneg %p54
        %p176 = pneg %p51
        %p177 = scmp.lt.s32.totalorder %s23, 1
        %s178 = scalar_select %p177, %s23, 1
        %s179 = smul.addr %s178, 8
        %s180 = scalar_lea.vmem %s1, %s179
        %p181 = pneg %p80
        %p182 = pneg %p77
        %p183 = pneg %p106
        %p184 = pneg %p103
        %s185 = sand.u32 %s93, 1
        %s186 = scalar_lea.sflag [#allocation7], %s185
        %s187 = sand.u32 %s93, 1
        %s188 = smul.addr %s187, 8
        %s189 = scalar_lea.vmem [#allocation8], %s188
        %p190 = scmp.lt.s32.totalorder %s23, 1
        %s191 = scalar_select %p190, %s23, 1
        %s192 = smul.addr %s191, 8
        %s193 = scalar_lea.vmem %s1, %s192
        %p194 = scmp.eq.s32.totalorder %s24, 0
        // Predicated region
        $region33: #{tpu_custom_call.1} parent=27 // pred_check
          %p195 = pneg %p194
        $region34: #{tpu_custom_call.1} parent=27 // pred_check_branch
          %197 = sbr.rel (%p195) target = $region36
        $region35: #{tpu_custom_call.1} parent=27 // pred_region
          %vm198 = vcmask 7168
          %199 = vst.msk [vmem:[#allocation2] sm:$0xff] %vm198, -inf
          %200 = vst.msk [vmem:[#allocation3] sm:$0xff] %vm198, 0.0
          %201 = vst.msk [vmem:[#allocation4] sm:$0xff] %vm198, 0.0
        $region36: #{tpu_custom_call.1} parent=27 // pred_fallthru
          _
        %v202 = vld [vmem:[%s164] sm:$0xff]
        %v203 = vld [vmem:[%s193] sm:$0xff]
        %v204 = vlaneseq
        %v205 = vand.u32 %v204, 127
        %s206 = smul.u32 %s24, 128
        %s207 = ssub.s32 500, %s206
        %v208 = vstv %s207
        %vm209 = vcmp.lt.s32.totalorder %v205, %v208
        %v210 = vsel %vm209, 1, 0
        %vm211 = vcmp.eq.s32.totalorder %v210, 1
        %v212 = vsel %vm211, %v202, -3.4028235e+38
        %v213 = vlaneseq
        %v214 = vshrl.u32 %v213, 7
        %s215 = smul.u32 %s23, 8
        %s216 = ssub.s32 14, %s215
        %v217 = vstv %s216
        %vm218 = vcmp.lt.s32.totalorder %v214, %v217
        %v219 = vsel %vm218, 1, 0
        %vm220 = vcmp.eq.s32.totalorder %v219, 1
        %v221 = vsel %vm220, %v212, 0.0
        %222 = vmax.xlane.f32.xlu0 %v221
        %v223 = vpop.xlane.xlu0 %222
        %v224 = vld [vmem:[#allocation2] sm:$0xff]
        %v225 = vmax.f32 %v224, %v223
        %v226 = vld [vmem:[#allocation3] sm:$0xff]
        %v227 = vsub.f32 %v224, %v225
        %v228 = vmul.f32 %v227, 1.442695
        %v229 = vpow.pop %v228
        %v230 = vmul.f32 %v226, %v229
        %232 = vset.pattern.permute.xlu0 0
        %233 = vperm.xlu0 %232, %v225
        %v234 = vpop.permute.xlu0 %233
        %v236 = vsub.f32 %v221, %v234
        %v237 = vmul.f32 %v236, 1.442695
        %v238 = vpow.pop %v237
        %239 = vadd.xlane.f32.xlu0 %v238
        %v240 = vpop.xlane.xlu0 %239
        %v241 = vadd.f32 %v230, %v240
        %vm242 = vcmask 7168
        %243 = vst.msk [vmem:[#allocation3] sm:$0xff] %vm242, %v241
        %244 = vst.msk [vmem:[#allocation2] sm:$0xff] %vm242, %v225
        %v245 = vstv %s206
        %v246 = vsub.s32 %v203, %v245
        %v247 = vld [vmem:[#allocation4] sm:$0xff]
        %248 = vset.pattern.permute.xlu0 0
        %249 = vperm.xlu0 %248, %v246
        %v250 = vpop.permute.xlu0 %249
        %vm251 = vcmp.eq.s32.totalorder %v205, %v250
        %v252 = vsel %vm251, %v221, 0.0
        %253 = vadd.xlane.f32.xlu0 %v252
        %v254 = vpop.xlane.xlu0 %253
        %v255 = vadd.f32 %v247, %v254
        %256 = vst.msk [vmem:[#allocation4] sm:$0xff] %vm242, %v255
        %p257 = scmp.eq.s32.totalorder %s24, 3
        // Predicated region
        $region37: #{tpu_custom_call.1} parent=27 // pred_check
          %p258 = pneg %p257
        $region38: #{tpu_custom_call.1} parent=27 // pred_check_branch
          %260 = sbr.rel (%p258) target = $region40
        $region39: #{tpu_custom_call.1} parent=27 // pred_region
          %v261 = vld [vmem:[#allocation3] sm:$0xff]
          %v262 = vlog2.pop %v261
          %v263 = vmul.f32 %v262, 0.6931472
          %v264 = vld [vmem:[#allocation2] sm:$0xff]
          %v265 = vadd.f32 %v263, %v264
          %vm266 = vcmp.ne.s32.totalorder %v203, 4294967295
          %vm267 = vmand %vm266, %vm218
          %v268 = vld [vmem:[#allocation4] sm:$0xff]
          %v269 = vsub.f32 %v265, %v268
          %v270 = vsel %vm267, 1, 0
          %v271 = vcvt.s32.f32 %v270
          %v272 = vmul.f32 %v269, %v271
          %v273 = vsel %vm242, %v272, 0.0
          %274 = vadd.xlane.f32.xlu0 %v273
          %v275 = vpop.xlane.xlu0 %274
          %v276 = vrot.slane %v275, 4
          %v277 = vadd.f32 %v275, %v276
          %v278 = vrot.slane %v277, 2
          %v279 = vadd.f32 %v277, %v278
          %v280 = vrot.slane %v279, 1
          %v281 = vadd.f32 %v279, %v280
          %s282 = vtos %v281
          %v283 = vstv %s282
          %284 = vst [vmem:[%s189] sm:$0xff] %v283
        $region40: #{tpu_custom_call.1} parent=27 // pred_fallthru
          _
        %s285 = sand.u32 %s93, 1
        %s286 = scalar_lea.sflag [#allocation7], %s285
        %s287 = sand.u32 %s93, 1
        %s288 = smul.addr %s287, 8
        %s289 = scalar_lea.vmem [#allocation8], %s288
        // Predicated region
        $region41: #{tpu_custom_call.1} parent=27 // pred_check
          %p290 = pneg %p103
        $region42: #{tpu_custom_call.1} parent=27 // pred_check_branch
          %292 = sbr.rel (%p290) target = $region44
        $region43: #{tpu_custom_call.1} parent=27 // pred_region
          %294 = vsyncadd %s286, 0
          %s295 = smul.addr %s23, 8
          %s296 = scalar_lea.hbm %s2, %s295
          %s298 = sshll.u32 %s289, 4
          %s299 = int_to_ptr.vmem [resolvable:$true] %s298
          %s300 = sshll.u32 %s296, 4
          %s301 = int_to_ptr.hbm [resolvable:$true] %s300
          %303 = dma.vmem_to_hbm [thread:$0]  %s299, 128, %s301, %s286
        $region44: #{tpu_custom_call.1} parent=27 // pred_fallthru
          _
      $region28: #{tpu_custom_call.1} parent=5 // pred_fallthru
        _
      %p304 = scmp.le.s32.totalorder 2, %s14
      // Predicated region
      $region45: #{tpu_custom_call.1} parent=5 // pred_check
        %p305 = pneg %p304
      $region46: #{tpu_custom_call.1} parent=5 // pred_check_branch
        %307 = sbr.rel (%p305) target = $region48
      $region47: #{tpu_custom_call.1} parent=5 // pred_region
        %s308 = ssub.s32 %s14, 2
        // Predicated region
        $region49: #{tpu_custom_call.1} parent=47 // pred_check
          %p309 = pneg %p109
        $region50: #{tpu_custom_call.1} parent=47 // pred_check_branch
          %311 = sbr.rel (%p309) target = $region52
        $region51: #{tpu_custom_call.1} parent=47 // pred_region
          %s312 = sand.u32 %s94, 1
          %s313 = scalar_lea.sflag [#allocation7], %s312
          %s314 = sand.u32 %s94, 1
          %s315 = smul.addr %s314, 8
          %s316 = scalar_lea.vmem [#allocation8], %s315
          %318 = dma.done %s313, 128
        $region52: #{tpu_custom_call.1} parent=47 // pred_fallthru
          _
      $region48: #{tpu_custom_call.1} parent=5 // pred_fallthru
        _
    $region6: #{tpu_custom_call.1} parent=1 // loop_footer
      %s18 = sadd.s32 1, %s14
    $region7: #{tpu_custom_call.1} parent=1 // loop_footer_branch
      %13 = sbr.rel target = $region3
    $region8: #{tpu_custom_call.1} parent=1 // loop_exit
      _
    %319 = vsyncpa [#allocation6], 1
    %s320 = scalar_lea.sflag [#allocation6], 1
    %321 = vsyncpa %s320, 1
    %322 = vsyncpa [#allocation7], 1
    %s323 = scalar_lea.sflag [#allocation7], 1
    %324 = vsyncpa %s323, 1

</llo_original>
